<compile_context>
chip_gen: v6e
topology: v6e:2x2x1
jax: 0.10.0
libtpu: 0.0.40
codegen_flags: <defaults>
</compile_context>

<pallas_src>
import numpy as np

import jax
import jax.numpy as jnp
from jax.experimental import pallas as pl
from jax.experimental.pallas import tpu as pltpu


_TILE_BYTE_BUDGET = 12 * 1024 * 1024   # double-buffered (in + out) tile budget
_VMEM_LIMIT_BYTES = 32 * 1024 * 1024   # explicit scoped-VMEM limit (fits all gens)
_MIN_ELEMS_FOR_PALLAS = 1 << 16        # heuristic crossover vs fused XLA gather


def _round_up(x, m):
    return (x + m - 1) // m * m


def _joint_mapper_kernel(sel_ref, joints_ref, out_ref):
    # sel_ref:    (J*C, O*C) float -- static block-one-hot selection matrix (resident)
    # joints_ref: (TB, J*C)  float -- one tile of batch rows (batch on sublanes)
    # out_ref:    (TB, O*C)  float
    out_ref[...] = jnp.dot(
        joints_ref[...], sel_ref[...],
        preferred_element_type=jnp.float32,
    ).astype(out_ref.dtype)


def _joint_mapper_pallas(joints, sel_np):
    """Batch-tiled one-hot-matmul gather. joints: (B, J, C) float, sel_np: (J*C, O*C)."""
    B, J, C = joints.shape
    JC = J * C
    OC = sel_np.shape[1]

    joints2d = joints.reshape(B, JC)                 # free reshape, no relayout
    sel = jnp.asarray(sel_np, dtype=joints.dtype)    # 0/1 exact in f32/bf16/f16

    itemsize = jnp.dtype(joints.dtype).itemsize
    sublane = max(8, 32 // itemsize)                 # 8 for f32, 16 for bf16/f16
    row_bytes = (JC + OC) * itemsize                 # in + out bytes per batch row

    # Largest batch tile whose double-buffered in+out tiles fit the budget.
    tb_cap = max(sublane,
                 (_TILE_BYTE_BUDGET // (2 * row_bytes)) // sublane * sublane)
    # Keep >=2 grid steps when B permits so both v7x TensorCores get work.
    if B >= 2 * sublane:
        tb_cap = min(tb_cap, _round_up(pl.cdiv(B, 2), sublane))

    if tb_cap >= B:
        TB = B                # single block: block dim == full array dim is allowed
    else:
        TB = tb_cap           # multiple of sublane; ragged last block handled by Pallas

    grid = (pl.cdiv(B, TB),)

    out2d = pl.pallas_call(
        _joint_mapper_kernel,
        out_shape=jax.ShapeDtypeStruct((B, OC), joints.dtype),
        grid_spec=pltpu.PrefetchScalarGridSpec(
            num_scalar_prefetch=0,
            grid=grid,
            in_specs=[
                pl.BlockSpec((JC, OC), lambda i: (0, 0)),   # selection matrix: tiny, resident
                pl.BlockSpec((TB, JC), lambda i: (i, 0)),   # joints rows: tiled on batch
            ],
            out_specs=pl.BlockSpec((TB, OC), lambda i: (i, 0)),
        ),
        compiler_params=pltpu.CompilerParams(
            dimension_semantics=("parallel",),              # megacore split on v7x
            vmem_limit_bytes=_VMEM_LIMIT_BYTES,
        ),
    )(sel, joints2d)

    return out2d.reshape(B, OC // C, C)                     # free reshape


def joint_mapper(joints, joint_maps=None, *, use_pallas=None):
    """Pallas implementation of JointMapper.forward.

    use_pallas: None -> size/dtype heuristic; True/False forces the path.
    """
    if joint_maps is None:
        return joints  # identity path: no joint_maps buffer registered

    B, J, C = joints.shape
    maps_np = np.asarray(joint_maps).reshape(-1).astype(np.int64)
    O = maps_np.shape[0]

    # torch.index_select raises on out-of-range / negative indices; match that.
    if O and (maps_np.min() < 0 or maps_np.max() >= J):
        raise IndexError(
            f"joint_maps contains indices outside [0, {J}) : "
            f"min={maps_np.min()}, max={maps_np.max()}"
        )

    dt = jnp.dtype(joints.dtype)
    mxu_ok = dt in (jnp.dtype(jnp.float32), jnp.dtype(jnp.bfloat16),
                    jnp.dtype(jnp.float16))               # f64 / ints: no MXU path
    if use_pallas is None:
        use_pallas = mxu_ok and O > 0 and (B * J * C >= _MIN_ELEMS_FOR_PALLAS)

    if (not use_pallas) or (not mxu_ok) or O == 0:
        # Small / integer / f64 / empty-map case: let XLA fuse the static gather.
        return jnp.take(joints, jnp.asarray(maps_np, dtype=jnp.int32), axis=1)

    # Static (J*C, O*C) block-one-hot built once (joint_maps is a registered buffer):
    # sel[maps[o]*C + c, o*C + c] = 1.
    sel_np = np.zeros((J * C, O * C), dtype=np.float32)
    rows = (maps_np[:, None] * C + np.arange(C)[None, :]).reshape(-1)
    sel_np[rows, np.arange(O * C)] = 1.0
    return _joint_mapper_pallas(joints, sel_np)


if __name__ == "__main__":
    key = jax.random.PRNGKey(0)

    # Deterministic joint map (plays the role of the registered buffer).
    joint_maps = [3, 0, 7, 12, 5, 15, 1, 9]
    maps_idx = jnp.asarray(joint_maps, dtype=jnp.int32)

    # --- Pallas kernel path (forced at small shape; grid of 2 batch tiles).
    B, J, C = 64, 24, 3
    joints = jax.random.normal(key, (B, J, C), dtype=jnp.float32)
    out = jax.block_until_ready(joint_mapper(joints, joint_maps, use_pallas=True))
    ref = jnp.take(joints, maps_idx, axis=1)
    assert out.shape == (B, len(joint_maps), C)
    assert out.dtype == joints.dtype
    assert jnp.array_equal(out, ref)

    # --- Ragged batch (B not divisible by the tile): exercises the partial last block.
    Br = 50
    joints_r = jax.random.normal(jax.random.PRNGKey(2), (Br, J, C), dtype=jnp.float32)
    out_r = jax.block_until_ready(joint_mapper(joints_r, joint_maps, use_pallas=True))
    assert jnp.array_equal(out_r, jnp.take(joints_r, maps_idx, axis=1))

    # --- Small-input heuristic: falls back to the fused XLA gather, same result.
    joints_s = jax.random.normal(jax.random.PRNGKey(1), (2, 16, 3), dtype=jnp.float32)
    out_s = jax.block_until_ready(joint_mapper(joints_s, joint_maps))
    assert jnp.array_equal(out_s, jnp.take(joints_s, maps_idx, axis=1))

    # --- Identity path (joint_maps is None) — returns input unchanged.
    ident = joint_mapper(joints, None)
    assert jnp.array_equal(ident, joints)

    print("KERNEL_OK")
</pallas_src>

<mosaic_0001>
module attributes {stable_mosaic.version = 11 : i64} {
  func.func @_joint_mapper_kernel(%arg0: i32, %arg1: memref<72x24xf32, #tpu.memory_space<vmem>>, %arg2: memref<32x72xf32, #tpu.memory_space<vmem>>, %arg3: memref<32x24xf32, #tpu.memory_space<vmem>>) attributes {dimension_semantics = [#tpu.dimension_semantics<parallel>], iteration_bounds = array<i64: 2>, scalar_prefetch = 0 : i64, scratch_operands = 0 : i64, tpu.core_type = #tpu.core_type<tc>, window_params = [{pipeline_mode = #tpu.pipeline_mode<synchronous>, transform_indices = @transform_0, window_bounds = array<i64: 72, 24>}, {transform_indices = @transform_1, window_bounds = array<i64: 32, 72>}, {transform_indices = @transform_2, window_bounds = array<i64: 32, 24>}]} {
    %c0 = arith.constant 0 : index
    %c0_0 = arith.constant 0 : index
    %0 = vector.load %arg2[%c0, %c0_0] : memref<32x72xf32, #tpu.memory_space<vmem>>, vector<32x72xf32>
    %c0_1 = arith.constant 0 : index
    %c0_2 = arith.constant 0 : index
    %1 = vector.load %arg1[%c0_1, %c0_2] : memref<72x24xf32, #tpu.memory_space<vmem>>, vector<72x24xf32>
    %cst = arith.constant dense<0.000000e+00> : vector<32x24xf32>
    %2 = tpu.matmul %0, %1, %cst {dimension_numbers = #tpu.dot_dimension_numbers<[1], [0], [0], [1], [0, 0, 1, 1], [], []>} : vector<32x72xf32>, vector<72x24xf32>, vector<32x24xf32> -> vector<32x24xf32>
    %c0_3 = arith.constant 0 : index
    %c0_4 = arith.constant 0 : index
    %3 = vector.load %arg3[%c0_3, %c0_4] : memref<32x24xf32, #tpu.memory_space<vmem>>, vector<32x24xf32>
    tpu.vector_store %arg3[%c0_3, %c0_4], %2 {strides = array<i32>} : memref<32x24xf32, #tpu.memory_space<vmem>>, vector<32x24xf32>,
    return
  }
  func.func @transform_0(%arg0: i32) -> (i32, i32) {
    %c0_i32 = arith.constant 0 : i32
    %c0_i32_0 = arith.constant 0 : i32
    %c0_i32_1 = arith.constant 0 : i32
    return %c0_i32, %c0_i32_0 : i32, i32
  }
  func.func @transform_1(%arg0: i32) -> (i32, i32) {
    %c0_i32 = arith.constant 0 : i32
    %c0_i32_0 = arith.constant 0 : i32
    return %arg0, %c0_i32 : i32, i32
  }
  func.func @transform_2(%arg0: i32) -> (i32, i32) {
    %c0_i32 = arith.constant 0 : i32
    %c0_i32_0 = arith.constant 0 : i32
    return %arg0, %c0_i32 : i32, i32
  }
}

</mosaic_0001>

<llo_original>
// kernel: tpu_custom_call.1
$region0: #{tpu_custom_call.1}
  #allocation0 [shape = 'u32[]', space=smem, size = 0x4, offset = 0x4, fixed_abs, tag = 'smem constant byte address 0x4 - core index']
  #allocation1 [shape = 'u32[144,128]{1,0:T(1,128)}', space=vmem, size = 0x12000, scoped, tag = 'internal scratch']
  %s0 = inlined_call_operand.vmem [shape: f32[72,24], index: 0, kind: input, shape index: {}]
  %s1 = inlined_call_operand.vmem [shape: f32[64,72], index: 1, kind: input, shape index: {}]
  %s2 = inlined_call_operand.vmem [shape: f32[64,24], index: 2, kind: output, shape index: {}]
  %s3 = sld [smem:[#allocation0]]
  $region41: #{tpu_custom_call.1} parent=0
    _
  %s5 = ssub.s32 1, %s3
  %s6 = scalar_select 0, %s5, %s3
  loop: start=0, step=1, limit=4
  $region2: #{tpu_custom_call.1} parent=0 // loop_pre_header
    _
  $region3: #{tpu_custom_call.1} parent=0 // loop_header
    %s8 = sphi 0, %s12
    %p9 = scmp.ge.s32.totalorder %s8, 4
    %s16 = sphi 0, %s16
    %s18 = sphi 0, %s16
    %s19 = sphi 0, %s18
    %s33 = sphi 0, %s19
    %s39 = sphi 0, %s41
    %s42 = sphi 0, %s39
    %s43 = sphi 0, %s42
    %s59 = sphi 0, %s43
    %s65 = sphi 0, %s67
    %s68 = sphi 0, %s65
    %s69 = sphi 0, %s68
    %s85 = sphi 0, %s69
  $region4: #{tpu_custom_call.1} parent=0 // loop_header_branch
    %11 = sbr.rel (%p9) target = $region8
  $region5: #{tpu_custom_call.1} parent=0 // loop_body
    %s13 = ssub.s32 %s8, 1
    %s14 = ssub.s32 %s8, 2
    %s15 = sadd.s32 %s8, 1
    %s17 = sadd.s32 %s16, 1
    %p20 = scmp.eq.s32.totalorder %s8, 1
    %p21 = scmp.ne.s32.totalorder %s16, %s18
    %p22 = scmp.eq.s32.totalorder %s8, 0
    %p23 = por %p21, %p22
    %p24 = scmp.ne.s32.totalorder %s16, %s18
    %p25 = scmp.eq.s32.totalorder %s13, 1
    %p26 = por %p24, %p25
    %p27 = scmp.ne.s32.totalorder %s18, %s19
    %p28 = scmp.eq.s32.totalorder %s13, 0
    %p29 = por %p27, %p28
    %p30 = scmp.ne.s32.totalorder %s18, %s19
    %p31 = scmp.eq.s32.totalorder %s14, 1
    %p32 = por %p30, %p31
    %p34 = scmp.ne.s32.totalorder %s19, %s33
    %p35 = scmp.eq.s32.totalorder %s14, 0
    %p36 = por %p34, %p35
    %s37 = ssub.s32 %s8, %s15
    %p38 = scmp.eq.s32.totalorder %s37, 0
    %s40 = sadd.s32 %s39, 1
    %s41 = scalar_select %p38, %s39, %s40
    %p44 = pneg %p38
    %p45 = scmp.eq.s32.totalorder %s8, 1
    %p46 = por %p44, %p45
    %p47 = scmp.ne.s32.totalorder %s39, %s42
    %p48 = scmp.eq.s32.totalorder %s8, 0
    %p49 = por %p47, %p48
    %p50 = scmp.ne.s32.totalorder %s39, %s42
    %p51 = scmp.eq.s32.totalorder %s13, 1
    %p52 = por %p50, %p51
    %p53 = scmp.ne.s32.totalorder %s42, %s43
    %p54 = scmp.eq.s32.totalorder %s13, 0
    %p55 = por %p53, %p54
    %p56 = scmp.ne.s32.totalorder %s42, %s43
    %p57 = scmp.eq.s32.totalorder %s14, 1
    %p58 = por %p56, %p57
    %p60 = scmp.ne.s32.totalorder %s43, %s59
    %p61 = scmp.eq.s32.totalorder %s14, 0
    %p62 = por %p60, %p61
    %s63 = ssub.s32 %s8, %s15
    %p64 = scmp.eq.s32.totalorder %s63, 0
    %s66 = sadd.s32 %s65, 1
    %s67 = scalar_select %p64, %s65, %s66
    %p70 = pneg %p64
    %p71 = scmp.eq.s32.totalorder %s8, 1
    %p72 = por %p70, %p71
    %p73 = scmp.ne.s32.totalorder %s65, %s68
    %p74 = scmp.eq.s32.totalorder %s8, 0
    %p75 = por %p73, %p74
    %p76 = scmp.ne.s32.totalorder %s65, %s68
    %p77 = scmp.eq.s32.totalorder %s13, 1
    %p78 = por %p76, %p77
    %p79 = scmp.ne.s32.totalorder %s68, %s69
    %p80 = scmp.eq.s32.totalorder %s13, 0
    %p81 = por %p79, %p80
    %p82 = scmp.ne.s32.totalorder %s68, %s69
    %p83 = scmp.eq.s32.totalorder %s14, 1
    %p84 = por %p82, %p83
    %p86 = scmp.ne.s32.totalorder %s69, %s85
    %p87 = scmp.eq.s32.totalorder %s14, 0
    %p88 = por %p86, %p87
    %p89 = scmp.le.s32.totalorder 1, %s8
    %p90 = scmp.lt.s32.totalorder %s8, 3
    %p91 = pnand %p89, %p90
    %p92 = pneg %p91
    // Predicated region
    $region9: #{tpu_custom_call.1} parent=5 // pred_check
      _
    $region10: #{tpu_custom_call.1} parent=5 // pred_check_branch
      %94 = sbr.rel (%p91) target = $region12
    $region11: #{tpu_custom_call.1} parent=5 // pred_region
      %s95 = ssub.s32 %s8, 1
      // Predicated region
      $region13: #{tpu_custom_call.1} parent=11 // pred_check
        %p96 = pneg %p29
      $region14: #{tpu_custom_call.1} parent=11 // pred_check_branch
        %98 = sbr.rel (%p96) target = $region16
      $region15: #{tpu_custom_call.1} parent=11 // pred_region
        _
      $region16: #{tpu_custom_call.1} parent=11 // pred_fallthru
        _
    $region12: #{tpu_custom_call.1} parent=5 // pred_fallthru
      _
    %p99 = scmp.lt.s32.totalorder %s8, 2
    // Predicated region
    $region17: #{tpu_custom_call.1} parent=5 // pred_check
      %p100 = pneg %p99
    $region18: #{tpu_custom_call.1} parent=5 // pred_check_branch
      %102 = sbr.rel (%p100) target = $region20
    $region19: #{tpu_custom_call.1} parent=5 // pred_region
      // Predicated region
      $region21: #{tpu_custom_call.1} parent=19 // pred_check
        %p103 = pneg %p49
      $region22: #{tpu_custom_call.1} parent=19 // pred_check_branch
        %105 = sbr.rel (%p103) target = $region24
      $region23: #{tpu_custom_call.1} parent=19 // pred_region
        %s106 = smul.u32 4, %s8
        %p107 = scmp.lt.s32.totalorder %s106, 7
        %s108 = scalar_select %p107, %s106, 7
        %s109 = smul.addr %s108, 8
        %s110 = scalar_lea.vmem %s1, %s109
        %s111 = smul.u32 4, %s8
      $region24: #{tpu_custom_call.1} parent=19 // pred_fallthru
        _
    $region20: #{tpu_custom_call.1} parent=5 // pred_fallthru
      _
    %p112 = scmp.le.s32.totalorder 1, %s8
    %p113 = scmp.lt.s32.totalorder %s8, 3
    %p114 = pnand %p112, %p113
    %p115 = pneg %p114
    // Predicated region
    $region25: #{tpu_custom_call.1} parent=5 // pred_check
      _
    $region26: #{tpu_custom_call.1} parent=5 // pred_check_branch
      %117 = sbr.rel (%p114) target = $region28
    $region27: #{tpu_custom_call.1} parent=5 // pred_region
      %s118 = ssub.s32 %s8, 1
      %p119 = pneg %p29
      %p120 = pneg %p26
      %s121 = smul.u32 4, %s13
      %p122 = scmp.lt.s32.totalorder %s121, 7
      %s123 = scalar_select %p122, %s121, 7
      %s124 = smul.addr %s123, 8
      %s125 = scalar_lea.vmem %s1, %s124
      %p126 = pneg %p55
      %p127 = pneg %p52
      %p128 = pneg %p81
      %p129 = pneg %p78
      %s130 = smul.u32 4, %s13
      %p131 = scmp.lt.s32.totalorder %s130, 7
      %s132 = scalar_select %p131, %s130, 7
      %s133 = smul.addr %s132, 8
      %s134 = scalar_lea.vmem %s2, %s133
      %s135 = smul.u32 4, %s13
      %p136 = scmp.lt.s32.totalorder %s135, 7
      %s137 = scalar_select %p136, %s135, 7
      %s138 = smul.addr %s137, 8
      %s139 = scalar_lea.vmem %s1, %s138
      %s140 = smul.u32 4, %s13
      %s141 = smul.u32 4, %s13
      %p142 = scmp.lt.s32.totalorder %s141, 7
      %s143 = scalar_select %p142, %s141, 7
      %s144 = smul.addr %s143, 8
      %s145 = scalar_lea.vmem %s2, %s144
      %s146 = smul.u32 4, %s13
      %v147 = vld [vmem:[%s139] sm:$0xff]
      %v148 = vld [vmem:[%s139 + $0x8] sm:$0xff]
      %v149 = vld [vmem:[%s139 + $0x10] sm:$0xff]
      %v150 = vld [vmem:[%s139 + $0x18] sm:$0xff]
      %v151 = vld [vmem:[%s0] sm:$0xff]
      %v152 = vld [vmem:[%s0 + $0x8] sm:$0xff]
      %v153 = vld [vmem:[%s0 + $0x10] sm:$0xff]
      %v154 = vld [vmem:[%s0 + $0x18] sm:$0xff]
      %v155 = vld [vmem:[%s0 + $0x20] sm:$0xff]
      %v156 = vld [vmem:[%s0 + $0x28] sm:$0xff]
      %v157 = vld [vmem:[%s0 + $0x30] sm:$0xff]
      %v158 = vld [vmem:[%s0 + $0x38] sm:$0xff]
      %v159 = vld [vmem:[%s0 + $0x40] sm:$0xff]
      %vm160 = vcmask 588800
      %v162 = vsel %vm160, %v147, 0
      %v165 = vsel %vm160, %v148, 0
      %v168 = vsel %vm160, %v149, 0
      %v171 = vsel %vm160, %v150, 0
      %173 = vmatprep.subr.mxu0 0.0
      %174 = vmatpush1.msra.mxu0 0.0
      %175 = vmatprep.subr.mxu0 0.0
      %176 = vmatpush1.msra.mxu0 0.0
      %177 = vmatprep.subr.mxu0 0.0
      %178 = vmatpush1.msra.mxu0 0.0
      %179 = vmatprep.subr.mxu0 0.0
      %180 = vmatpush1.msra.mxu0 0.0
      %181 = vmatprep.subr.mxu0 0.0
      %182 = vmatpush1.msra.mxu0 0.0
      %183 = vmatprep.subr.mxu0 0.0
      %184 = vmatpush1.msra.mxu0 0.0
      %185 = vmatprep.subr.mxu0 0.0
      %186 = vmatpush1.msra.mxu0 0.0
      %187 = vmatprep.subr.mxu0 0.0
      %188 = vmatpush1.msra.mxu0 %v159
      %189 = vmatprep.subr.mxu0 0.0
      %190 = vmatpush1.msra.mxu0 %v158
      %191 = vmatprep.subr.mxu0 0.0
      %192 = vmatpush1.msra.mxu0 %v157
      %193 = vmatprep.subr.mxu0 0.0
      %194 = vmatpush1.msra.mxu0 %v156
      %195 = vmatprep.subr.mxu0 0.0
      %196 = vmatpush1.msra.mxu0 %v155
      %197 = vmatprep.subr.mxu0 0.0
      %198 = vmatpush1.msra.mxu0 %v154
      %199 = vmatprep.subr.mxu0 0.0
      %200 = vmatpush1.msra.mxu0 %v153
      %201 = vmatprep.subr.mxu0 0.0
      %202 = vmatpush1.msra.mxu0 %v152
      %203 = vmatprep.subr.mxu0 0.0
      %204 = vmatpush1.msra.mxu0 %v151
      %205 = vmatprep.subr.mxu0 0.0
      %206 = vmatpush2.msra.mxu0 0.0
      %207 = vmatprep.subr.mxu0 0.0
      %208 = vmatpush2.msra.mxu0 0.0
      %209 = vmatprep.subr.mxu0 0.0
      %210 = vmatpush2.msra.mxu0 0.0
      %211 = vmatprep.subr.mxu0 0.0
      %212 = vmatpush2.msra.mxu0 0.0
      %213 = vmatprep.subr.mxu0 0.0
      %214 = vmatpush2.msra.mxu0 0.0
      %215 = vmatprep.subr.mxu0 0.0
      %216 = vmatpush2.msra.mxu0 0.0
      %217 = vmatprep.subr.mxu0 0.0
      %218 = vmatpush2.msra.mxu0 0.0
      %219 = vmatprep.subr.mxu0 0.0
      %220 = vmatpush2.msra.mxu0 0.0
      %221 = vmatprep.subr.mxu0 0.0
      %222 = vmatpush2.msra.mxu0 0.0
      %223 = vmatprep.subr.mxu0 0.0
      %224 = vmatpush2.msra.mxu0 0.0
      %225 = vmatprep.subr.mxu0 0.0
      %226 = vmatpush2.msra.mxu0 0.0
      %227 = vmatprep.subr.mxu0 0.0
      %228 = vmatpush2.msra.mxu0 0.0
      %229 = vmatprep.subr.mxu0 0.0
      %230 = vmatpush2.msra.mxu0 0.0
      %231 = vmatprep.subr.mxu0 0.0
      %232 = vmatpush2.msra.mxu0 0.0
      %233 = vmatprep.subr.mxu0 0.0
      %234 = vmatpush2.msra.mxu0 0.0
      %235 = vmatprep.subr.mxu0 0.0
      %236 = vmatpush2.msra.mxu0 0.0
      %237 = vmatprep.mubr.f32.mxu0 0.0
      %238 = vmatmul.mubr.f32.gmra.mxu0 %v162
      %v239 = vpop.f32.mrf.mxu0
      %v240 = vadd.f32 0.0, %v239
      %v241 = vpop.f32.mrf.mxu0
      %242 = vmatprep.mubr.f32.mxu0 0.0
      %243 = vmatmul.mubr.f32.gmra.mxu0 %v165
      %v244 = vpop.f32.mrf.mxu0
      %v245 = vadd.f32 0.0, %v244
      %v246 = vpop.f32.mrf.mxu0
      %247 = vmatprep.mubr.f32.mxu0 0.0
      %248 = vmatmul.mubr.f32.gmra.mxu0 %v168
      %v249 = vpop.f32.mrf.mxu0
      %v250 = vadd.f32 0.0, %v249
      %v251 = vpop.f32.mrf.mxu0
      %252 = vmatprep.mubr.f32.mxu0 0.0
      %253 = vmatmul.mubr.f32.gmra.mxu0 %v171
      %v254 = vpop.f32.mrf.mxu0
      %v255 = vadd.f32 0.0, %v254
      %v256 = vpop.f32.mrf.mxu0
      %257 = vdwg.mxu0
      %vm258 = vcmask 195584
      %259 = vst.msk [vmem:[%s145] sm:$0xff] %vm258, %v240
      %260 = vst.msk [vmem:[%s145 + $0x8] sm:$0xff] %vm258, %v245
      %261 = vst.msk [vmem:[%s145 + $0x10] sm:$0xff] %vm258, %v250
      %262 = vst.msk [vmem:[%s145 + $0x18] sm:$0xff] %vm258, %v255
      %s263 = smul.u32 4, %s13
      %p264 = scmp.lt.s32.totalorder %s263, 7
      %s265 = scalar_select %p264, %s263, 7
      %s266 = smul.addr %s265, 8
      %s267 = scalar_lea.vmem %s2, %s266
      // Predicated region
      $region29: #{tpu_custom_call.1} parent=27 // pred_check
        %p268 = pneg %p78
      $region30: #{tpu_custom_call.1} parent=27 // pred_check_branch
        %270 = sbr.rel (%p268) target = $region32
      $region31: #{tpu_custom_call.1} parent=27 // pred_region
        %s271 = smul.u32 4, %s13
      $region32: #{tpu_custom_call.1} parent=27 // pred_fallthru
        _
    $region28: #{tpu_custom_call.1} parent=5 // pred_fallthru
      _
    %p272 = scmp.le.s32.totalorder 2, %s8
    // Predicated region
    $region33: #{tpu_custom_call.1} parent=5 // pred_check
      %p273 = pneg %p272
    $region34: #{tpu_custom_call.1} parent=5 // pred_check_branch
      %275 = sbr.rel (%p273) target = $region36
    $region35: #{tpu_custom_call.1} parent=5 // pred_region
      %s276 = ssub.s32 %s8, 2
      // Predicated region
      $region37: #{tpu_custom_call.1} parent=35 // pred_check
        %p277 = pneg %p84
      $region38: #{tpu_custom_call.1} parent=35 // pred_check_branch
        %279 = sbr.rel (%p277) target = $region40
      $region39: #{tpu_custom_call.1} parent=35 // pred_region
        %s280 = smul.u32 4, %s14
        %p281 = scmp.lt.s32.totalorder %s280, 7
        %s282 = scalar_select %p281, %s280, 7
        %s283 = smul.addr %s282, 8
        %s284 = scalar_lea.vmem %s2, %s283
      $region40: #{tpu_custom_call.1} parent=35 // pred_fallthru
        _
    $region36: #{tpu_custom_call.1} parent=5 // pred_fallthru
      _
  $region6: #{tpu_custom_call.1} parent=0 // loop_footer
    %s12 = sadd.s32 1, %s8
  $region7: #{tpu_custom_call.1} parent=0 // loop_footer_branch
    %7 = sbr.rel target = $region3
  $region8: #{tpu_custom_call.1} parent=0 // loop_exit
    _

</llo_original>
